<compile_context>
chip_gen: v5e
topology: v5e:2x2
jax: 0.10.0
libtpu: 0.0.40
codegen_flags: <defaults>
</compile_context>

<pallas_src>
import jax
import jax.numpy as jnp
from jax import lax
from jax.experimental import pallas as pl
from jax.experimental.pallas import tpu as pltpu
import numpy as np


def bilstm_kernel(x_ref, w_in_ref, b_in_ref, whh_f_ref, wfc_ref, bfc_ref, out_ref):
    TB, D = x_ref.shape                 # x is time-major, flattened: (T*B, D), bf16
    H = whh_f_ref.shape[0]
    H4 = 4 * H
    B = out_ref.shape[0]
    T = TB // B
    f32 = jnp.float32
    bf16 = jnp.bfloat16

    # Lane-index mask selecting the cell-candidate ("g") segment [2H, 3H) of a packed
    # 4H gate axis.  Built once, reused every step (JAX does not CSE broadcasts).
    lane = lax.broadcasted_iota(jnp.int32, (B, H4), 1)
    g_seg = (lane >= 2 * H) & (lane < 3 * H)

    def activate(pre):
        # i/f/o columns were pre-scaled by 0.5 in the wrapper, so ONE full-width tanh
        # (single EUP pass) covers all four gates: sigmoid(z) == 0.5*tanh(z/2) + 0.5.
        t = jnp.tanh(pre)
        return jnp.where(g_seg, t, 0.5 * t + 0.5)

    def state_from_zero(act):
        # LSTM cell step from (h, c) = 0:  c = i*g,  h = o*tanh(c)
        c = act[:, 0:H] * act[:, 2 * H:3 * H]
        h = act[:, 3 * H:4 * H] * jnp.tanh(c)
        return h, c

    # ---------------- hoisted input projection for BOTH directions -------------------
    # One (T*B, D) x (D, 8H) MXU call, bias folded in once.  Forward gates are lanes
    # [0, 4H); backward gates are lanes [4H, 8H).
    gx = (jnp.dot(x_ref[...], w_in_ref[...], preferred_element_type=f32)
          + b_in_ref[...])                                               # (T*B, 8H) f32

    wfc = wfc_ref[...]                                                   # (2H, Cp) bf16

    # ---------------- backward direction (independent of the forward recurrence) ----
    # out_seq[:, -1, H:2H] is exactly one reverse cell step from zero state on x[T-1];
    # its pre-activation is the upper 4H lanes of gx's last B rows.  Its FC
    # contribution is also issued here so it fills the prologue.
    pre_b = gx[(T - 1) * B:T * B, H4:2 * H4]                             # (B, 4H) f32
    h_bwd, _ = state_from_zero(activate(pre_b))
    y = jnp.dot(h_bwd.astype(bf16), wfc[H:2 * H, :],
                preferred_element_type=f32) + bfc_ref[...]               # (B, Cp) f32

    # ---------------- forward direction ----------------------------------------------
    whh_f = whh_f_ref[...]                                               # (H, 4H) bf16

    # t = 0 from zero state: no recurrent matmul needed.
    h, c = state_from_zero(activate(gx[0:B, 0:H4]))

    # Static full unroll over time (T small & static) -- equivalent to
    # lax.fori_loop(..., unroll=True); the scheduler overlaps EUP/VALU gate math of
    # step t with the MXU push/pop latency of the recurrent matmul.
    for t in range(1, T):
        pre = gx[t * B:(t + 1) * B, 0:H4] + jnp.dot(
            h.astype(bf16), whh_f, preferred_element_type=f32)
        act = activate(pre)
        c = act[:, H:2 * H] * c + act[:, 0:H] * act[:, 2 * H:3 * H]
        h = act[:, 3 * H:4 * H] * jnp.tanh(c)

    # ---------------- FC head: only the forward contribution remains after the loop --
    y = y + jnp.dot(h.astype(bf16), wfc[0:H, :], preferred_element_type=f32)
    out_ref[...] = jnp.maximum(y, 0.0)


def bilstm_forward(x, params):
    """x: (B, T, D) float32, batch_first like the PyTorch module."""
    (wih_f, whh_f, b_f, wih_b, whh_b, b_b, wfc, bfc) = params
    del whh_b  # backward direction starts from zero state at t = T-1 -> h @ Whh_b = 0
    B, T, D = x.shape
    H = whh_f.shape[0]
    C = wfc.shape[1]
    SUB, LANE = 8, 128
    Bp = -(-B // SUB) * SUB          # pad batch to a sublane multiple
    Cp = -(-C // LANE) * LANE        # pad FC output to 128 lanes (unmasked store)
    bf16 = jnp.bfloat16

    # Pre-scale the i/f/o gate columns by 0.5 so a single in-kernel tanh implements
    # both the sigmoid gates (0.5*tanh(z/2)+0.5) and the tanh gate.
    gate_scale = jnp.concatenate(
        [jnp.full((1, H), 0.5, jnp.float32),
         jnp.full((1, H), 0.5, jnp.float32),
         jnp.ones((1, H), jnp.float32),
         jnp.full((1, H), 0.5, jnp.float32)], axis=1)                    # (1, 4H)
    wih_f_s, whh_f_s, b_f_s = wih_f * gate_scale, whh_f * gate_scale, b_f * gate_scale
    wih_b_s, b_b_s = wih_b * gate_scale, b_b * gate_scale

    # Combined input-projection weight / bias for both directions: (D, 8H), (1, 8H).
    # 8H = 256 lanes fills the 256-wide MXU on v6e/v7x in the hoisted projection.
    w_in = jnp.concatenate([wih_f_s, wih_b_s], axis=1).astype(bf16)
    b_in = jnp.concatenate([b_f_s, b_b_s], axis=1)

    # Time-major, batch-padded, flattened x -> single (T*Bp, D) x (D, 8H) matmul.
    x_tm = jnp.transpose(x, (1, 0, 2))                                   # (T, B, D)
    x_tm = jnp.pad(x_tm, ((0, 0), (0, Bp - B), (0, 0)))
    x2d = x_tm.reshape(T * Bp, D).astype(bf16)

    # Single lane-padded FC weight slab, sliced in-kernel with static offsets.
    wfc_p = jnp.pad(wfc, ((0, 0), (0, Cp - C))).astype(bf16)             # (2H, Cp)
    bfc_p = jnp.pad(bfc, ((0, 0), (0, Cp - C)))                          # (1, Cp)

    vmem = pl.BlockSpec(memory_space=pltpu.MemorySpace.VMEM)
    out = pl.pallas_call(
        bilstm_kernel,
        out_shape=jax.ShapeDtypeStruct((Bp, Cp), jnp.float32),
        in_specs=[vmem] * 6,
        out_specs=vmem,
    )(x2d, w_in, b_in, whh_f_s.astype(bf16), wfc_p, bfc_p)
    return out[:B, :C]


def ref_bilstm_forward(x, params):
    """Pure-JAX float32 reference of the same forward pass."""
    (wih_f, whh_f, b_f, wih_b, whh_b, b_b, wfc, bfc) = params
    B, T, D = x.shape
    H = whh_f.shape[0]

    def cell(xt, h, c, wih, whh, b):
        g = xt @ wih + h @ whh + b
        i_g = jax.nn.sigmoid(g[:, 0 * H:1 * H])
        f_g = jax.nn.sigmoid(g[:, 1 * H:2 * H])
        g_g = jnp.tanh(g[:, 2 * H:3 * H])
        o_g = jax.nn.sigmoid(g[:, 3 * H:4 * H])
        c_new = f_g * c + i_g * g_g
        return o_g * jnp.tanh(c_new), c_new

    def step(carry, xt):
        h, c = carry
        h, c = cell(xt, h, c, wih_f, whh_f, b_f)
        return (h, c), None

    h0 = jnp.zeros((B, H), jnp.float32)
    c0 = jnp.zeros((B, H), jnp.float32)
    (h_fwd, _), _ = lax.scan(step, (h0, c0), jnp.transpose(x, (1, 0, 2)))
    h_bwd, _ = cell(x[:, -1, :], h0, c0, wih_b, whh_b, b_b)
    feat = jnp.concatenate([h_fwd, h_bwd], axis=-1)
    return jnp.maximum(feat @ wfc + bfc, 0.0)


def init_params(key, input_size, hidden_size, num_classes):
    D, H, C = input_size, hidden_size, num_classes
    k_lstm = 1.0 / np.sqrt(H)
    k_fc = 1.0 / np.sqrt(2 * H)
    keys = jax.random.split(key, 8)
    u = lambda k, shape, b: jax.random.uniform(k, shape, jnp.float32, -b, b)
    wih_f = u(keys[0], (D, 4 * H), k_lstm)
    whh_f = u(keys[1], (H, 4 * H), k_lstm)
    b_f = u(keys[2], (1, 4 * H), k_lstm)   # folded b_ih + b_hh
    wih_b = u(keys[3], (D, 4 * H), k_lstm)
    whh_b = u(keys[4], (H, 4 * H), k_lstm)
    b_b = u(keys[5], (1, 4 * H), k_lstm)
    wfc = u(keys[6], (2 * H, C), k_fc)
    bfc = u(keys[7], (1, C), k_fc)
    return (wih_f, whh_f, b_f, wih_b, whh_b, b_b, wfc, bfc)


if __name__ == "__main__":
    # small shapes consistent with the module's forward: x is (batch, seq, input_size)
    B, T, D, H, C = 4, 8, 8, 32, 4

    key = jax.random.PRNGKey(0)
    kx, kp = jax.random.split(key)
    x = jax.random.normal(kx, (B, T, D), jnp.float32)
    params = init_params(kp, input_size=D, hidden_size=H, num_classes=C)

    out = jax.block_until_ready(bilstm_forward(x, params))
    ref = jax.block_until_ready(ref_bilstm_forward(x, params))

    # bf16 MXU operands (f32 accumulation / f32 gate math) => slightly looser tolerance
    np.testing.assert_allclose(np.asarray(out), np.asarray(ref), rtol=2e-2, atol=2e-2)
    assert out.shape == (B, C)
    print("KERNEL_OK")
</pallas_src>

<mosaic_0001>
module attributes {stable_mosaic.version = 11 : i64} {
  func.func @bilstm_kernel(%arg0: memref<64x8xbf16, #tpu.memory_space<vmem>>, %arg1: memref<8x256xbf16, #tpu.memory_space<vmem>>, %arg2: memref<1x256xf32, #tpu.memory_space<vmem>>, %arg3: memref<32x128xbf16, #tpu.memory_space<vmem>>, %arg4: memref<64x128xbf16, #tpu.memory_space<vmem>>, %arg5: memref<1x128xf32, #tpu.memory_space<vmem>>, %arg6: memref<8x128xf32, #tpu.memory_space<vmem>>) attributes {dimension_semantics = [], scalar_prefetch = 0 : i64, scratch_operands = 0 : i64, tpu.core_type = #tpu.core_type<tc>} {
    %0 = tpu.iota {dimensions = array<i32: 1>} : vector<8x128xi32>
    %c64_i32 = arith.constant 64 : i32
    %1 = vector.broadcast %c64_i32 : i32 to vector<8x128xi32>
    %2 = arith.cmpi sge, %0, %1 : vector<8x128xi32>
    %c96_i32 = arith.constant 96 : i32
    %3 = vector.broadcast %c96_i32 : i32 to vector<8x128xi32>
    %4 = arith.cmpi slt, %0, %3 : vector<8x128xi32>
    %5 = arith.andi %2, %4 : vector<8x128xi1>
    %c0 = arith.constant 0 : index
    %c0_0 = arith.constant 0 : index
    %6 = vector.load %arg0[%c0, %c0_0] : memref<64x8xbf16, #tpu.memory_space<vmem>>, vector<64x8xbf16>
    %c0_1 = arith.constant 0 : index
    %c0_2 = arith.constant 0 : index
    %7 = vector.load %arg1[%c0_1, %c0_2] : memref<8x256xbf16, #tpu.memory_space<vmem>>, vector<8x256xbf16>
    %cst = arith.constant dense<0.000000e+00> : vector<64x256xf32>
    %8 = tpu.matmul %6, %7, %cst {dimension_numbers = #tpu.dot_dimension_numbers<[1], [0], [0], [1], [0, 0, 1, 1], [], []>} : vector<64x8xbf16>, vector<8x256xbf16>, vector<64x256xf32> -> vector<64x256xf32>
    %c0_3 = arith.constant 0 : index
    %c0_4 = arith.constant 0 : index
    %9 = vector.load %arg2[%c0_3, %c0_4] : memref<1x256xf32, #tpu.memory_space<vmem>>, vector<1x256xf32>
    %10 = vector.broadcast %9 : vector<1x256xf32> to vector<64x256xf32>
    %11 = arith.addf %8, %10 : vector<64x256xf32>
    %c0_5 = arith.constant 0 : index
    %c0_6 = arith.constant 0 : index
    %12 = vector.load %arg4[%c0_5, %c0_6] : memref<64x128xbf16, #tpu.memory_space<vmem>>, vector<64x128xbf16>
    %13 = vector.extract_strided_slice %11 {offsets = [56, 128], sizes = [8, 128], strides = [1, 1]} : vector<64x256xf32> to vector<8x128xf32>
    %14 = math.tanh %13 : vector<8x128xf32>
    %cst_7 = arith.constant 5.000000e-01 : f32
    %15 = vector.broadcast %cst_7 : f32 to vector<8x128xf32>
    %16 = arith.mulf %15, %14 : vector<8x128xf32>
    %cst_8 = arith.constant 5.000000e-01 : f32
    %17 = vector.broadcast %cst_8 : f32 to vector<8x128xf32>
    %18 = arith.addf %16, %17 : vector<8x128xf32>
    %19 = arith.select %5, %14, %18 : vector<8x128xi1>, vector<8x128xf32>
    %20 = vector.extract_strided_slice %19 {offsets = [0, 0], sizes = [8, 32], strides = [1, 1]} : vector<8x128xf32> to vector<8x32xf32>
    %21 = vector.extract_strided_slice %19 {offsets = [0, 64], sizes = [8, 32], strides = [1, 1]} : vector<8x128xf32> to vector<8x32xf32>
    %22 = arith.mulf %20, %21 : vector<8x32xf32>
    %23 = vector.extract_strided_slice %19 {offsets = [0, 96], sizes = [8, 32], strides = [1, 1]} : vector<8x128xf32> to vector<8x32xf32>
    %24 = math.tanh %22 : vector<8x32xf32>
    %25 = arith.mulf %23, %24 : vector<8x32xf32>
    %26 = arith.truncf %25 : vector<8x32xf32> to vector<8x32xbf16>
    %27 = vector.extract_strided_slice %12 {offsets = [32, 0], sizes = [32, 128], strides = [1, 1]} : vector<64x128xbf16> to vector<32x128xbf16>
    %cst_9 = arith.constant dense<0.000000e+00> : vector<8x128xf32>
    %28 = tpu.matmul %26, %27, %cst_9 {dimension_numbers = #tpu.dot_dimension_numbers<[1], [0], [0], [1], [0, 0, 1, 1], [], []>} : vector<8x32xbf16>, vector<32x128xbf16>, vector<8x128xf32> -> vector<8x128xf32>
    %c0_10 = arith.constant 0 : index
    %c0_11 = arith.constant 0 : index
    %29 = vector.load %arg5[%c0_10, %c0_11] : memref<1x128xf32, #tpu.memory_space<vmem>>, vector<1x128xf32>
    %30 = vector.broadcast %29 : vector<1x128xf32> to vector<8x128xf32>
    %31 = arith.addf %28, %30 : vector<8x128xf32>
    %c0_12 = arith.constant 0 : index
    %c0_13 = arith.constant 0 : index
    %32 = vector.load %arg3[%c0_12, %c0_13] : memref<32x128xbf16, #tpu.memory_space<vmem>>, vector<32x128xbf16>
    %33 = vector.extract_strided_slice %11 {offsets = [0, 0], sizes = [8, 128], strides = [1, 1]} : vector<64x256xf32> to vector<8x128xf32>
    %34 = math.tanh %33 : vector<8x128xf32>
    %cst_14 = arith.constant 5.000000e-01 : f32
    %35 = vector.broadcast %cst_14 : f32 to vector<8x128xf32>
    %36 = arith.mulf %35, %34 : vector<8x128xf32>
    %cst_15 = arith.constant 5.000000e-01 : f32
    %37 = vector.broadcast %cst_15 : f32 to vector<8x128xf32>
    %38 = arith.addf %36, %37 : vector<8x128xf32>
    %39 = arith.select %5, %34, %38 : vector<8x128xi1>, vector<8x128xf32>
    %40 = vector.extract_strided_slice %39 {offsets = [0, 0], sizes = [8, 32], strides = [1, 1]} : vector<8x128xf32> to vector<8x32xf32>
    %41 = vector.extract_strided_slice %39 {offsets = [0, 64], sizes = [8, 32], strides = [1, 1]} : vector<8x128xf32> to vector<8x32xf32>
    %42 = arith.mulf %40, %41 : vector<8x32xf32>
    %43 = vector.extract_strided_slice %39 {offsets = [0, 96], sizes = [8, 32], strides = [1, 1]} : vector<8x128xf32> to vector<8x32xf32>
    %44 = math.tanh %42 : vector<8x32xf32>
    %45 = arith.mulf %43, %44 : vector<8x32xf32>
    %46 = vector.extract_strided_slice %11 {offsets = [8, 0], sizes = [8, 128], strides = [1, 1]} : vector<64x256xf32> to vector<8x128xf32>
    %47 = arith.truncf %45 : vector<8x32xf32> to vector<8x32xbf16>
    %cst_16 = arith.constant dense<0.000000e+00> : vector<8x128xf32>
    %48 = tpu.matmul %47, %32, %cst_16 {dimension_numbers = #tpu.dot_dimension_numbers<[1], [0], [0], [1], [0, 0, 1, 1], [], []>} : vector<8x32xbf16>, vector<32x128xbf16>, vector<8x128xf32> -> vector<8x128xf32>
    %49 = arith.addf %46, %48 : vector<8x128xf32>
    %50 = math.tanh %49 : vector<8x128xf32>
    %cst_17 = arith.constant 5.000000e-01 : f32
    %51 = vector.broadcast %cst_17 : f32 to vector<8x128xf32>
    %52 = arith.mulf %51, %50 : vector<8x128xf32>
    %cst_18 = arith.constant 5.000000e-01 : f32
    %53 = vector.broadcast %cst_18 : f32 to vector<8x128xf32>
    %54 = arith.addf %52, %53 : vector<8x128xf32>
    %55 = arith.select %5, %50, %54 : vector<8x128xi1>, vector<8x128xf32>
    %56 = vector.extract_strided_slice %55 {offsets = [0, 32], sizes = [8, 32], strides = [1, 1]} : vector<8x128xf32> to vector<8x32xf32>
    %57 = arith.mulf %56, %42 : vector<8x32xf32>
    %58 = vector.extract_strided_slice %55 {offsets = [0, 0], sizes = [8, 32], strides = [1, 1]} : vector<8x128xf32> to vector<8x32xf32>
    %59 = vector.extract_strided_slice %55 {offsets = [0, 64], sizes = [8, 32], strides = [1, 1]} : vector<8x128xf32> to vector<8x32xf32>
    %60 = arith.mulf %58, %59 : vector<8x32xf32>
    %61 = arith.addf %57, %60 : vector<8x32xf32>
    %62 = vector.extract_strided_slice %55 {offsets = [0, 96], sizes = [8, 32], strides = [1, 1]} : vector<8x128xf32> to vector<8x32xf32>
    %63 = math.tanh %61 : vector<8x32xf32>
    %64 = arith.mulf %62, %63 : vector<8x32xf32>
    %65 = vector.extract_strided_slice %11 {offsets = [16, 0], sizes = [8, 128], strides = [1, 1]} : vector<64x256xf32> to vector<8x128xf32>
    %66 = arith.truncf %64 : vector<8x32xf32> to vector<8x32xbf16>
    %cst_19 = arith.constant dense<0.000000e+00> : vector<8x128xf32>
    %67 = tpu.matmul %66, %32, %cst_19 {dimension_numbers = #tpu.dot_dimension_numbers<[1], [0], [0], [1], [0, 0, 1, 1], [], []>} : vector<8x32xbf16>, vector<32x128xbf16>, vector<8x128xf32> -> vector<8x128xf32>
    %68 = arith.addf %65, %67 : vector<8x128xf32>
    %69 = math.tanh %68 : vector<8x128xf32>
    %cst_20 = arith.constant 5.000000e-01 : f32
    %70 = vector.broadcast %cst_20 : f32 to vector<8x128xf32>
    %71 = arith.mulf %70, %69 : vector<8x128xf32>
    %cst_21 = arith.constant 5.000000e-01 : f32
    %72 = vector.broadcast %cst_21 : f32 to vector<8x128xf32>
    %73 = arith.addf %71, %72 : vector<8x128xf32>
    %74 = arith.select %5, %69, %73 : vector<8x128xi1>, vector<8x128xf32>
    %75 = vector.extract_strided_slice %74 {offsets = [0, 32], sizes = [8, 32], strides = [1, 1]} : vector<8x128xf32> to vector<8x32xf32>
    %76 = arith.mulf %75, %61 : vector<8x32xf32>
    %77 = vector.extract_strided_slice %74 {offsets = [0, 0], sizes = [8, 32], strides = [1, 1]} : vector<8x128xf32> to vector<8x32xf32>
    %78 = vector.extract_strided_slice %74 {offsets = [0, 64], sizes = [8, 32], strides = [1, 1]} : vector<8x128xf32> to vector<8x32xf32>
    %79 = arith.mulf %77, %78 : vector<8x32xf32>
    %80 = arith.addf %76, %79 : vector<8x32xf32>
    %81 = vector.extract_strided_slice %74 {offsets = [0, 96], sizes = [8, 32], strides = [1, 1]} : vector<8x128xf32> to vector<8x32xf32>
    %82 = math.tanh %80 : vector<8x32xf32>
    %83 = arith.mulf %81, %82 : vector<8x32xf32>
    %84 = vector.extract_strided_slice %11 {offsets = [24, 0], sizes = [8, 128], strides = [1, 1]} : vector<64x256xf32> to vector<8x128xf32>
    %85 = arith.truncf %83 : vector<8x32xf32> to vector<8x32xbf16>
    %cst_22 = arith.constant dense<0.000000e+00> : vector<8x128xf32>
    %86 = tpu.matmul %85, %32, %cst_22 {dimension_numbers = #tpu.dot_dimension_numbers<[1], [0], [0], [1], [0, 0, 1, 1], [], []>} : vector<8x32xbf16>, vector<32x128xbf16>, vector<8x128xf32> -> vector<8x128xf32>
    %87 = arith.addf %84, %86 : vector<8x128xf32>
    %88 = math.tanh %87 : vector<8x128xf32>
    %cst_23 = arith.constant 5.000000e-01 : f32
    %89 = vector.broadcast %cst_23 : f32 to vector<8x128xf32>
    %90 = arith.mulf %89, %88 : vector<8x128xf32>
    %cst_24 = arith.constant 5.000000e-01 : f32
    %91 = vector.broadcast %cst_24 : f32 to vector<8x128xf32>
    %92 = arith.addf %90, %91 : vector<8x128xf32>
    %93 = arith.select %5, %88, %92 : vector<8x128xi1>, vector<8x128xf32>
    %94 = vector.extract_strided_slice %93 {offsets = [0, 32], sizes = [8, 32], strides = [1, 1]} : vector<8x128xf32> to vector<8x32xf32>
    %95 = arith.mulf %94, %80 : vector<8x32xf32>
    %96 = vector.extract_strided_slice %93 {offsets = [0, 0], sizes = [8, 32], strides = [1, 1]} : vector<8x128xf32> to vector<8x32xf32>
    %97 = vector.extract_strided_slice %93 {offsets = [0, 64], sizes = [8, 32], strides = [1, 1]} : vector<8x128xf32> to vector<8x32xf32>
    %98 = arith.mulf %96, %97 : vector<8x32xf32>
    %99 = arith.addf %95, %98 : vector<8x32xf32>
    %100 = vector.extract_strided_slice %93 {offsets = [0, 96], sizes = [8, 32], strides = [1, 1]} : vector<8x128xf32> to vector<8x32xf32>
    %101 = math.tanh %99 : vector<8x32xf32>
    %102 = arith.mulf %100, %101 : vector<8x32xf32>
    %103 = vector.extract_strided_slice %11 {offsets = [32, 0], sizes = [8, 128], strides = [1, 1]} : vector<64x256xf32> to vector<8x128xf32>
    %104 = arith.truncf %102 : vector<8x32xf32> to vector<8x32xbf16>
    %cst_25 = arith.constant dense<0.000000e+00> : vector<8x128xf32>
    %105 = tpu.matmul %104, %32, %cst_25 {dimension_numbers = #tpu.dot_dimension_numbers<[1], [0], [0], [1], [0, 0, 1, 1], [], []>} : vector<8x32xbf16>, vector<32x128xbf16>, vector<8x128xf32> -> vector<8x128xf32>
    %106 = arith.addf %103, %105 : vector<8x128xf32>
    %107 = math.tanh %106 : vector<8x128xf32>
    %cst_26 = arith.constant 5.000000e-01 : f32
    %108 = vector.broadcast %cst_26 : f32 to vector<8x128xf32>
    %109 = arith.mulf %108, %107 : vector<8x128xf32>
    %cst_27 = arith.constant 5.000000e-01 : f32
    %110 = vector.broadcast %cst_27 : f32 to vector<8x128xf32>
    %111 = arith.addf %109, %110 : vector<8x128xf32>
    %112 = arith.select %5, %107, %111 : vector<8x128xi1>, vector<8x128xf32>
    %113 = vector.extract_strided_slice %112 {offsets = [0, 32], sizes = [8, 32], strides = [1, 1]} : vector<8x128xf32> to vector<8x32xf32>
    %114 = arith.mulf %113, %99 : vector<8x32xf32>
    %115 = vector.extract_strided_slice %112 {offsets = [0, 0], sizes = [8, 32], strides = [1, 1]} : vector<8x128xf32> to vector<8x32xf32>
    %116 = vector.extract_strided_slice %112 {offsets = [0, 64], sizes = [8, 32], strides = [1, 1]} : vector<8x128xf32> to vector<8x32xf32>
    %117 = arith.mulf %115, %116 : vector<8x32xf32>
    %118 = arith.addf %114, %117 : vector<8x32xf32>
    %119 = vector.extract_strided_slice %112 {offsets = [0, 96], sizes = [8, 32], strides = [1, 1]} : vector<8x128xf32> to vector<8x32xf32>
    %120 = math.tanh %118 : vector<8x32xf32>
    %121 = arith.mulf %119, %120 : vector<8x32xf32>
    %122 = vector.extract_strided_slice %11 {offsets = [40, 0], sizes = [8, 128], strides = [1, 1]} : vector<64x256xf32> to vector<8x128xf32>
    %123 = arith.truncf %121 : vector<8x32xf32> to vector<8x32xbf16>
    %cst_28 = arith.constant dense<0.000000e+00> : vector<8x128xf32>
    %124 = tpu.matmul %123, %32, %cst_28 {dimension_numbers = #tpu.dot_dimension_numbers<[1], [0], [0], [1], [0, 0, 1, 1], [], []>} : vector<8x32xbf16>, vector<32x128xbf16>, vector<8x128xf32> -> vector<8x128xf32>
    %125 = arith.addf %122, %124 : vector<8x128xf32>
    %126 = math.tanh %125 : vector<8x128xf32>
    %cst_29 = arith.constant 5.000000e-01 : f32
    %127 = vector.broadcast %cst_29 : f32 to vector<8x128xf32>
    %128 = arith.mulf %127, %126 : vector<8x128xf32>
    %cst_30 = arith.constant 5.000000e-01 : f32
    %129 = vector.broadcast %cst_30 : f32 to vector<8x128xf32>
    %130 = arith.addf %128, %129 : vector<8x128xf32>
    %131 = arith.select %5, %126, %130 : vector<8x128xi1>, vector<8x128xf32>
    %132 = vector.extract_strided_slice %131 {offsets = [0, 32], sizes = [8, 32], strides = [1, 1]} : vector<8x128xf32> to vector<8x32xf32>
    %133 = arith.mulf %132, %118 : vector<8x32xf32>
    %134 = vector.extract_strided_slice %131 {offsets = [0, 0], sizes = [8, 32], strides = [1, 1]} : vector<8x128xf32> to vector<8x32xf32>
    %135 = vector.extract_strided_slice %131 {offsets = [0, 64], sizes = [8, 32], strides = [1, 1]} : vector<8x128xf32> to vector<8x32xf32>
    %136 = arith.mulf %134, %135 : vector<8x32xf32>
    %137 = arith.addf %133, %136 : vector<8x32xf32>
    %138 = vector.extract_strided_slice %131 {offsets = [0, 96], sizes = [8, 32], strides = [1, 1]} : vector<8x128xf32> to vector<8x32xf32>
    %139 = math.tanh %137 : vector<8x32xf32>
    %140 = arith.mulf %138, %139 : vector<8x32xf32>
    %141 = vector.extract_strided_slice %11 {offsets = [48, 0], sizes = [8, 128], strides = [1, 1]} : vector<64x256xf32> to vector<8x128xf32>
    %142 = arith.truncf %140 : vector<8x32xf32> to vector<8x32xbf16>
    %cst_31 = arith.constant dense<0.000000e+00> : vector<8x128xf32>
    %143 = tpu.matmul %142, %32, %cst_31 {dimension_numbers = #tpu.dot_dimension_numbers<[1], [0], [0], [1], [0, 0, 1, 1], [], []>} : vector<8x32xbf16>, vector<32x128xbf16>, vector<8x128xf32> -> vector<8x128xf32>
    %144 = arith.addf %141, %143 : vector<8x128xf32>
    %145 = math.tanh %144 : vector<8x128xf32>
    %cst_32 = arith.constant 5.000000e-01 : f32
    %146 = vector.broadcast %cst_32 : f32 to vector<8x128xf32>
    %147 = arith.mulf %146, %145 : vector<8x128xf32>
    %cst_33 = arith.constant 5.000000e-01 : f32
    %148 = vector.broadcast %cst_33 : f32 to vector<8x128xf32>
    %149 = arith.addf %147, %148 : vector<8x128xf32>
    %150 = arith.select %5, %145, %149 : vector<8x128xi1>, vector<8x128xf32>
    %151 = vector.extract_strided_slice %150 {offsets = [0, 32], sizes = [8, 32], strides = [1, 1]} : vector<8x128xf32> to vector<8x32xf32>
    %152 = arith.mulf %151, %137 : vector<8x32xf32>
    %153 = vector.extract_strided_slice %150 {offsets = [0, 0], sizes = [8, 32], strides = [1, 1]} : vector<8x128xf32> to vector<8x32xf32>
    %154 = vector.extract_strided_slice %150 {offsets = [0, 64], sizes = [8, 32], strides = [1, 1]} : vector<8x128xf32> to vector<8x32xf32>
    %155 = arith.mulf %153, %154 : vector<8x32xf32>
    %156 = arith.addf %152, %155 : vector<8x32xf32>
    %157 = vector.extract_strided_slice %150 {offsets = [0, 96], sizes = [8, 32], strides = [1, 1]} : vector<8x128xf32> to vector<8x32xf32>
    %158 = math.tanh %156 : vector<8x32xf32>
    %159 = arith.mulf %157, %158 : vector<8x32xf32>
    %160 = vector.extract_strided_slice %11 {offsets = [56, 0], sizes = [8, 128], strides = [1, 1]} : vector<64x256xf32> to vector<8x128xf32>
    %161 = arith.truncf %159 : vector<8x32xf32> to vector<8x32xbf16>
    %cst_34 = arith.constant dense<0.000000e+00> : vector<8x128xf32>
    %162 = tpu.matmul %161, %32, %cst_34 {dimension_numbers = #tpu.dot_dimension_numbers<[1], [0], [0], [1], [0, 0, 1, 1], [], []>} : vector<8x32xbf16>, vector<32x128xbf16>, vector<8x128xf32> -> vector<8x128xf32>
    %163 = arith.addf %160, %162 : vector<8x128xf32>
    %164 = math.tanh %163 : vector<8x128xf32>
    %cst_35 = arith.constant 5.000000e-01 : f32
    %165 = vector.broadcast %cst_35 : f32 to vector<8x128xf32>
    %166 = arith.mulf %165, %164 : vector<8x128xf32>
    %cst_36 = arith.constant 5.000000e-01 : f32
    %167 = vector.broadcast %cst_36 : f32 to vector<8x128xf32>
    %168 = arith.addf %166, %167 : vector<8x128xf32>
    %169 = arith.select %5, %164, %168 : vector<8x128xi1>, vector<8x128xf32>
    %170 = vector.extract_strided_slice %169 {offsets = [0, 32], sizes = [8, 32], strides = [1, 1]} : vector<8x128xf32> to vector<8x32xf32>
    %171 = arith.mulf %170, %156 : vector<8x32xf32>
    %172 = vector.extract_strided_slice %169 {offsets = [0, 0], sizes = [8, 32], strides = [1, 1]} : vector<8x128xf32> to vector<8x32xf32>
    %173 = vector.extract_strided_slice %169 {offsets = [0, 64], sizes = [8, 32], strides = [1, 1]} : vector<8x128xf32> to vector<8x32xf32>
    %174 = arith.mulf %172, %173 : vector<8x32xf32>
    %175 = arith.addf %171, %174 : vector<8x32xf32>
    %176 = vector.extract_strided_slice %169 {offsets = [0, 96], sizes = [8, 32], strides = [1, 1]} : vector<8x128xf32> to vector<8x32xf32>
    %177 = math.tanh %175 : vector<8x32xf32>
    %178 = arith.mulf %176, %177 : vector<8x32xf32>
    %179 = arith.truncf %178 : vector<8x32xf32> to vector<8x32xbf16>
    %180 = vector.extract_strided_slice %12 {offsets = [0, 0], sizes = [32, 128], strides = [1, 1]} : vector<64x128xbf16> to vector<32x128xbf16>
    %cst_37 = arith.constant dense<0.000000e+00> : vector<8x128xf32>
    %181 = tpu.matmul %179, %180, %cst_37 {dimension_numbers = #tpu.dot_dimension_numbers<[1], [0], [0], [1], [0, 0, 1, 1], [], []>} : vector<8x32xbf16>, vector<32x128xbf16>, vector<8x128xf32> -> vector<8x128xf32>
    %182 = arith.addf %31, %181 : vector<8x128xf32>
    %cst_38 = arith.constant 0.000000e+00 : f32
    %183 = vector.broadcast %cst_38 : f32 to vector<8x128xf32>
    %184 = arith.maximumf %182, %183 : vector<8x128xf32>
    %c0_39 = arith.constant 0 : index
    %c0_40 = arith.constant 0 : index
    %185 = vector.load %arg6[%c0_39, %c0_40] : memref<8x128xf32, #tpu.memory_space<vmem>>, vector<8x128xf32>
    tpu.vector_store %arg6[%c0_39, %c0_40], %184 {strides = array<i32>} : memref<8x128xf32, #tpu.memory_space<vmem>>, vector<8x128xf32>,
    return
  }
}

</mosaic_0001>

<llo_original>
// kernel: tpu_custom_call.1
$region0: #{tpu_custom_call.1}
  #allocation0 [shape = 'u32[]', space=smem, size = 0x4, offset = 0x4, fixed_abs, tag = 'smem constant byte address 0x4 - core index']
  #allocation1 [shape = 'u32[72,128]{1,0:T(1,128)}', space=vmem, size = 0x9000, scoped, tag = 'internal scratch']
  %s0 = inlined_call_operand.vmem [shape: bf16[64,8], index: 0, kind: input, shape index: {}]
  %s1 = inlined_call_operand.hbm [shape: bf16[8,256], index: 1, kind: input, shape index: {}]
  %s2 = inlined_call_operand.vmem [shape: f32[1,256], index: 2, kind: input, shape index: {}]
  %s3 = inlined_call_operand.hbm [shape: bf16[32,128], index: 3, kind: input, shape index: {}]
  %s4 = inlined_call_operand.vmem [shape: bf16[64,128], index: 4, kind: input, shape index: {}]
  %s5 = inlined_call_operand.vmem [shape: f32[1,128], index: 5, kind: input, shape index: {}]
  %s6 = inlined_call_operand.hbm [shape: f32[8,128], index: 6, kind: output, shape index: {}]
  %s7 = sld [smem:[#allocation0]]
  $region42: #{tpu_custom_call.1} parent=0
    _
  %s9 = ssub.s32 1, %s7
  %s10 = scalar_select 0, %s9, %s7
  $region1: #{tpu_custom_call.1} parent=0
    #allocation2 [shape = 'u8[4096]{0}', space=vmem, size = 0x1000, scoped, tag = 'input window, operand 1, single buffered']
    #allocation3 [shape = 's32[1]{0}', space=sflag, size = 0x4, scoped, tag = 'scoped memory for tpu_custom_call.1']
    #allocation4 [shape = 's32[1]{0}', space=sflag, size = 0x4, scoped, tag = 'scoped memory for tpu_custom_call.1']
    #allocation5 [shape = 'u8[8192]{0}', space=vmem, size = 0x2000, scoped, tag = 'input window, operand 3, single buffered']
    #allocation6 [shape = 's32[1]{0}', space=sflag, size = 0x4, scoped, tag = 'scoped memory for tpu_custom_call.1']
    #allocation7 [shape = 'u8[4096]{0}', space=vmem, size = 0x1000, scoped, tag = 'output window, operand 0, single buffered']
    %11 = vsyncpa [#allocation3], 0
    %12 = vsyncpa [#allocation6], 0
    %13 = vsyncpa [#allocation4], 0
    // Predicated region
    $region2: #{tpu_custom_call.1} parent=1 // pred_check
      _
    $region3: #{tpu_custom_call.1} parent=1 // pred_check_branch
      %15 = sbr.rel (0) target = $region5
    $region4: #{tpu_custom_call.1} parent=1 // pred_region
      _
    $region5: #{tpu_custom_call.1} parent=1 // pred_fallthru
      _
    // Predicated region
    $region6: #{tpu_custom_call.1} parent=1 // pred_check
      _
    $region7: #{tpu_custom_call.1} parent=1 // pred_check_branch
      %17 = sbr.rel (0) target = $region9
    $region8: #{tpu_custom_call.1} parent=1 // pred_region
      %19 = vsyncadd [#allocation3], 0
      %s21 = sshll.u32 %s1, 4
      %s22 = int_to_ptr.hbm [resolvable:$true] %s21
      %s23 = sshll.u32 [#allocation2], 4
      %s24 = int_to_ptr.vmem [resolvable:$true] %s23
      %26 = dma.hbm_to_vmem [thread:$0]  %s22, 128, %s24, [#allocation3]
    $region9: #{tpu_custom_call.1} parent=1 // pred_fallthru
      _
    // Predicated region
    $region10: #{tpu_custom_call.1} parent=1 // pred_check
      _
    $region11: #{tpu_custom_call.1} parent=1 // pred_check_branch
      %28 = sbr.rel (0) target = $region13
    $region12: #{tpu_custom_call.1} parent=1 // pred_region
      _
    $region13: #{tpu_custom_call.1} parent=1 // pred_fallthru
      _
    // Predicated region
    $region14: #{tpu_custom_call.1} parent=1 // pred_check
      _
    $region15: #{tpu_custom_call.1} parent=1 // pred_check_branch
      %30 = sbr.rel (0) target = $region17
    $region16: #{tpu_custom_call.1} parent=1 // pred_region
      %32 = vsyncadd [#allocation6], 0
      %s33 = sshll.u32 %s3, 4
      %s34 = int_to_ptr.hbm [resolvable:$true] %s33
      %s35 = sshll.u32 [#allocation5], 4
      %s36 = int_to_ptr.vmem [resolvable:$true] %s35
      %41 = dma.hbm_to_vmem [thread:$0]  %s34, 256, %s36, [#allocation6], 64, 64, 4
    $region17: #{tpu_custom_call.1} parent=1 // pred_fallthru
      _
    // Predicated region
    $region18: #{tpu_custom_call.1} parent=1 // pred_check
      _
    $region19: #{tpu_custom_call.1} parent=1 // pred_check_branch
      %43 = sbr.rel (0) target = $region21
    $region20: #{tpu_custom_call.1} parent=1 // pred_region
      _
    $region21: #{tpu_custom_call.1} parent=1 // pred_fallthru
      _
    // Predicated region
    $region22: #{tpu_custom_call.1} parent=1 // pred_check
      _
    $region23: #{tpu_custom_call.1} parent=1 // pred_check_branch
      %45 = sbr.rel (0) target = $region25
    $region24: #{tpu_custom_call.1} parent=1 // pred_region
      _
    $region25: #{tpu_custom_call.1} parent=1 // pred_fallthru
      _
    // Predicated region
    $region26: #{tpu_custom_call.1} parent=1 // pred_check
      _
    $region27: #{tpu_custom_call.1} parent=1 // pred_check_branch
      %47 = sbr.rel (0) target = $region29
    $region28: #{tpu_custom_call.1} parent=1 // pred_region
      %49 = dma.done [#allocation3], 128
    $region29: #{tpu_custom_call.1} parent=1 // pred_fallthru
      _
    // Predicated region
    $region30: #{tpu_custom_call.1} parent=1 // pred_check
      _
    $region31: #{tpu_custom_call.1} parent=1 // pred_check_branch
      %51 = sbr.rel (0) target = $region33
    $region32: #{tpu_custom_call.1} parent=1 // pred_region
      %53 = dma.done [#allocation6], 256
    $region33: #{tpu_custom_call.1} parent=1 // pred_fallthru
      _
    %v55 = vlaneseq
    %v56 = vand.u32 %v55, 127
    %vm57 = vcmp.ge.s32.totalorder %v56, 64
    %vm58 = vcmp.lt.s32.totalorder %v56, 96
    %vm59 = vmand %vm57, %vm58
    %v60 = vld [vmem:[%s0] sm:$0xf]
    %v61 = vld [vmem:[%s0 + $0x4] sm:$0xf]
    %v62 = vld [vmem:[%s0 + $0x8] sm:$0xf]
    %v63 = vld [vmem:[%s0 + $0xc] sm:$0xf]
    %v64 = vld [vmem:[%s0 + $0x10] sm:$0xf]
    %v65 = vld [vmem:[%s0 + $0x14] sm:$0xf]
    %v66 = vld [vmem:[%s0 + $0x18] sm:$0xf]
    %v67 = vld [vmem:[%s0 + $0x1c] sm:$0xf]
    %v68 = vld [vmem:[#allocation2] sm:$0xff]
    %v69 = vld [vmem:[%s2] sm:$0x3]
    %v71 = vperm.slane %v69, 0
    %v72 = vperm.slane %v69, 1
    %v83 = vunpack.c.l.b16 %v60
    %v84 = vunpack.c.l.b16 %v61
    %v85 = vunpack.c.l.b16 %v62
    %v86 = vunpack.c.l.b16 %v63
    %v87 = vunpack.c.l.b16 %v64
    %v88 = vunpack.c.l.b16 %v65
    %v89 = vunpack.c.l.b16 %v66
    %v90 = vunpack.c.l.b16 %v67
    %v91 = vpack.c.b16 %v84, %v83
    %v92 = vpack.c.b16 %v86, %v85
    %v93 = vpack.c.b16 %v88, %v87
    %v94 = vpack.c.b16 %v90, %v89
    %v96 = vunpack.c.l.b16 %v68
    %v97 = vunpack.c.h.b16 %v68
    %v98 = vpack.c.b16 %v96, %v96
    %v99 = vpack.c.b16 %v97, %v97
    %vm100 = vcmask 64512
    %v102 = vsel %vm100, %v91, 0
    %v105 = vsel %vm100, %v92, 0
    %v108 = vsel %vm100, %v93, 0
    %v111 = vsel %vm100, %v94, 0
    %vm113 = vcmask 1043456
    %v115 = vsel %vm113, %v98, 0
    %v118 = vsel %vm113, %v99, 0
    %120 = vmatpush.bf16.msra.mxu0 0
    %121 = vmatpush.bf16.msra.mxu0 0
    %122 = vmatpush.bf16.msra.mxu0 0
    %123 = vmatpush.bf16.msra.mxu0 0
    %124 = vmatpush.bf16.msra.mxu0 0
    %125 = vmatpush.bf16.msra.mxu0 0
    %126 = vmatpush.bf16.msra.mxu0 0
    %127 = vmatpush.bf16.msra.mxu0 %v115
    %128 = vmatmul.bf16.gmra.mxu0 %v102
    %v129 = vpop.f32.mrf.mxu0
    %v130 = vadd.f32 %v71, %v129
    %v131 = vpop.f32.mrf.mxu0
    %v132 = vadd.f32 %v71, %v131
    %133 = vmatmul.bf16.gmra.mxu0 %v105
    %v134 = vpop.f32.mrf.mxu0
    %v135 = vadd.f32 %v71, %v134
    %v136 = vpop.f32.mrf.mxu0
    %v137 = vadd.f32 %v71, %v136
    %138 = vmatmul.bf16.gmra.mxu0 %v108
    %v139 = vpop.f32.mrf.mxu0
    %v140 = vadd.f32 %v71, %v139
    %v141 = vpop.f32.mrf.mxu0
    %v142 = vadd.f32 %v71, %v141
    %143 = vmatmul.bf16.gmra.mxu0 %v111
    %v144 = vpop.f32.mrf.mxu0
    %v145 = vadd.f32 %v71, %v144
    %v146 = vpop.f32.mrf.mxu0
    %v147 = vadd.f32 %v71, %v146
    %148 = vdwg.mxu0
    %149 = vmatpush.bf16.msra.mxu0 0
    %150 = vmatpush.bf16.msra.mxu0 0
    %151 = vmatpush.bf16.msra.mxu0 0
    %152 = vmatpush.bf16.msra.mxu0 0
    %153 = vmatpush.bf16.msra.mxu0 0
    %154 = vmatpush.bf16.msra.mxu0 0
    %155 = vmatpush.bf16.msra.mxu0 0
    %156 = vmatpush.bf16.msra.mxu0 %v118
    %157 = vmatmul.bf16.gmra.mxu0 %v102
    %v158 = vpop.f32.mrf.mxu0
    %v159 = vpop.f32.mrf.mxu0
    %160 = vmatmul.bf16.gmra.mxu0 %v105
    %v161 = vpop.f32.mrf.mxu0
    %v162 = vpop.f32.mrf.mxu0
    %163 = vmatmul.bf16.gmra.mxu0 %v108
    %v164 = vpop.f32.mrf.mxu0
    %v165 = vpop.f32.mrf.mxu0
    %166 = vmatmul.bf16.gmra.mxu0 %v111
    %v167 = vpop.f32.mrf.mxu0
    %v168 = vpop.f32.mrf.mxu0
    %v169 = vadd.f32 %v72, %v168
    %170 = vdwg.mxu0
    %v171 = vld [vmem:[%s4] sm:$0xf]
    %v172 = vld [vmem:[%s4 + $0x4] sm:$0xf]
    %v173 = vld [vmem:[%s4 + $0x8] sm:$0xf]
    %v174 = vld [vmem:[%s4 + $0xc] sm:$0xf]
    %v175 = vld [vmem:[%s4 + $0x10] sm:$0xf]
    %v176 = vld [vmem:[%s4 + $0x14] sm:$0xf]
    %v177 = vld [vmem:[%s4 + $0x18] sm:$0xf]
    %v178 = vld [vmem:[%s4 + $0x1c] sm:$0xf]
    %v179 = vtanh.pop %v169
    %v180 = vmul.f32 %v179, 0.5
    %v181 = vadd.f32 %v180, 0.5
    %v182 = vsel %vm59, %v179, %v181
    %184 = vrot.lane.b32.xlu0 %v182, 64
    %v185 = vpop.permute.xlu0 %184
    %v187 = vmul.f32 %v182, %v185
    %v188 = vtanh.pop %v187
    %190 = vrot.lane.b32.xlu0 %v188, 96
    %v191 = vpop.permute.xlu0 %190
    %v193 = vmul.f32 %v182, %v191
    %v194 = vpack.c.bf16 %v193, %v193
    %v195 = vld [vmem:[%s5] sm:$0x1]
    %v197 = vperm.slane %v195, 0
    %200 = vrot.lane.b32.xlu0 %v194, 32
    %v201 = vpop.permute.xlu0 %200
    %v206 = vunpack.c.l.b16 %v175
    %v207 = vunpack.c.l.b16 %v176
    %v208 = vunpack.c.l.b16 %v177
    %v209 = vunpack.c.l.b16 %v178
    %v210 = vpack.c.b16 %v207, %v206
    %v211 = vpack.c.b16 %v209, %v208
    %vm214 = vcmask 261120
    %v216 = vsel %vm214, %v201, 0
    %218 = vmatpush.bf16.msra.mxu0 0
    %219 = vmatpush.bf16.msra.mxu0 0
    %220 = vmatpush.bf16.msra.mxu0 0
    %221 = vmatpush.bf16.msra.mxu0 0
    %222 = vmatpush.bf16.msra.mxu0 0
    %223 = vmatpush.bf16.msra.mxu0 0
    %224 = vmatpush.bf16.msra.mxu0 %v211
    %225 = vmatpush.bf16.msra.mxu0 %v210
    %226 = vmatmul.bf16.gmra.mxu0 %v216
    %v227 = vpop.f32.mrf.mxu0
    %v228 = vadd.f32 %v197, %v227
    %v229 = vpop.f32.mrf.mxu0
    %230 = vdwg.mxu0
    %v231 = vld [vmem:[#allocation5] sm:$0xf]
    %v232 = vld [vmem:[#allocation5 + $0x4] sm:$0xf]
    %v233 = vld [vmem:[#allocation5 + $0x8] sm:$0xf]
    %v234 = vld [vmem:[#allocation5 + $0xc] sm:$0xf]
    %v235 = vtanh.pop %v130
    %v236 = vmul.f32 %v235, 0.5
    %v237 = vadd.f32 %v236, 0.5
    %v238 = vsel %vm59, %v235, %v237
    %240 = vrot.lane.b32.xlu0 %v238, 64
    %v241 = vpop.permute.xlu0 %240
    %v243 = vmul.f32 %v238, %v241
    %v244 = vtanh.pop %v243
    %246 = vrot.lane.b32.xlu0 %v244, 96
    %v247 = vpop.permute.xlu0 %246
    %v249 = vmul.f32 %v238, %v247
    %v250 = vpack.c.bf16 %v249, %v249
    %252 = vrot.lane.b32.xlu0 %v250, 32
    %v253 = vpop.permute.xlu0 %252
    %v258 = vunpack.c.l.b16 %v231
    %v259 = vunpack.c.l.b16 %v232
    %v260 = vunpack.c.l.b16 %v233
    %v261 = vunpack.c.l.b16 %v234
    %v262 = vpack.c.b16 %v259, %v258
    %v263 = vpack.c.b16 %v261, %v260
    %v267 = vsel %vm214, %v253, 0
    %269 = vmatpush.bf16.msra.mxu0 0
    %270 = vmatpush.bf16.msra.mxu0 0
    %271 = vmatpush.bf16.msra.mxu0 0
    %272 = vmatpush.bf16.msra.mxu0 0
    %273 = vmatpush.bf16.msra.mxu0 0
    %274 = vmatpush.bf16.msra.mxu0 0
    %275 = vmatpush.bf16.msra.mxu0 %v263
    %276 = vmatpush.bf16.msra.mxu0 %v262
    %277 = vmatmul.bf16.gmra.mxu0 %v267
    %v278 = vpop.f32.mrf.mxu0
    %v279 = vadd.f32 0.0, %v278
    %v280 = vpop.f32.mrf.mxu0
    %281 = vdwg.mxu0
    %v282 = vadd.f32 %v132, %v279
    %v283 = vtanh.pop %v282
    %v284 = vmul.f32 %v283, 0.5
    %v285 = vadd.f32 %v284, 0.5
    %v286 = vsel %vm59, %v283, %v285
    %288 = vrot.lane.b32.xlu0 %v243, 32
    %v289 = vpop.permute.xlu0 %288
    %v291 = vmul.f32 %v286, %v289
    %293 = vrot.lane.b32.xlu0 %v286, 64
    %v294 = vpop.permute.xlu0 %293
    %v296 = vmul.f32 %v286, %v294
    %298 = vrot.lane.b32.xlu0 %v296, 32
    %v299 = vpop.permute.xlu0 %298
    %v301 = vadd.f32 %v291, %v299
    %v302 = vtanh.pop %v301
    %304 = vrot.lane.b32.xlu0 %v302, 64
    %v305 = vpop.permute.xlu0 %304
    %v307 = vmul.f32 %v286, %v305
    %v308 = vpack.c.bf16 %v307, %v307
    %310 = vrot.lane.b32.xlu0 %v308, 32
    %v311 = vpop.permute.xlu0 %310
    %v313 = vsel %vm214, %v311, 0
    %315 = vmatpush.bf16.msra.mxu0 0
    %316 = vmatpush.bf16.msra.mxu0 0
    %317 = vmatpush.bf16.msra.mxu0 0
    %318 = vmatpush.bf16.msra.mxu0 0
    %319 = vmatpush.bf16.msra.mxu0 0
    %320 = vmatpush.bf16.msra.mxu0 0
    %321 = vmatpush.bf16.msra.mxu0 %v263
    %322 = vmatpush.bf16.msra.mxu0 %v262
    %323 = vmatmul.bf16.gmra.mxu0 %v313
    %v324 = vpop.f32.mrf.mxu0
    %v325 = vadd.f32 0.0, %v324
    %v326 = vpop.f32.mrf.mxu0
    %327 = vdwg.mxu0
    %v328 = vadd.f32 %v135, %v325
    %v329 = vtanh.pop %v328
    %v330 = vmul.f32 %v329, 0.5
    %v331 = vadd.f32 %v330, 0.5
    %v332 = vsel %vm59, %v329, %v331
    %v333 = vmul.f32 %v332, %v301
    %335 = vrot.lane.b32.xlu0 %v332, 64
    %v336 = vpop.permute.xlu0 %335
    %v338 = vmul.f32 %v332, %v336
    %340 = vrot.lane.b32.xlu0 %v338, 32
    %v341 = vpop.permute.xlu0 %340
    %v343 = vadd.f32 %v333, %v341
    %v344 = vtanh.pop %v343
    %346 = vrot.lane.b32.xlu0 %v344, 64
    %v347 = vpop.permute.xlu0 %346
    %v349 = vmul.f32 %v332, %v347
    %v350 = vpack.c.bf16 %v349, %v349
    %352 = vrot.lane.b32.xlu0 %v350, 32
    %v353 = vpop.permute.xlu0 %352
    %v355 = vsel %vm214, %v353, 0
    %357 = vmatpush.bf16.msra.mxu0 0
    %358 = vmatpush.bf16.msra.mxu0 0
    %359 = vmatpush.bf16.msra.mxu0 0
    %360 = vmatpush.bf16.msra.mxu0 0
    %361 = vmatpush.bf16.msra.mxu0 0
    %362 = vmatpush.bf16.msra.mxu0 0
    %363 = vmatpush.bf16.msra.mxu0 %v263
    %364 = vmatpush.bf16.msra.mxu0 %v262
    %365 = vmatmul.bf16.gmra.mxu0 %v355
    %v366 = vpop.f32.mrf.mxu0
    %v367 = vadd.f32 0.0, %v366
    %v368 = vpop.f32.mrf.mxu0
    %369 = vdwg.mxu0
    %v370 = vadd.f32 %v137, %v367
    %v371 = vtanh.pop %v370
    %v372 = vmul.f32 %v371, 0.5
    %v373 = vadd.f32 %v372, 0.5
    %v374 = vsel %vm59, %v371, %v373
    %v375 = vmul.f32 %v374, %v343
    %377 = vrot.lane.b32.xlu0 %v374, 64
    %v378 = vpop.permute.xlu0 %377
    %v380 = vmul.f32 %v374, %v378
    %382 = vrot.lane.b32.xlu0 %v380, 32
    %v383 = vpop.permute.xlu0 %382
    %v385 = vadd.f32 %v375, %v383
    %v386 = vtanh.pop %v385
    %388 = vrot.lane.b32.xlu0 %v386, 64
    %v389 = vpop.permute.xlu0 %388
    %v391 = vmul.f32 %v374, %v389
    %v392 = vpack.c.bf16 %v391, %v391
    %394 = vrot.lane.b32.xlu0 %v392, 32
    %v395 = vpop.permute.xlu0 %394
    %v397 = vsel %vm214, %v395, 0
    %399 = vmatpush.bf16.msra.mxu0 0
    %400 = vmatpush.bf16.msra.mxu0 0
    %401 = vmatpush.bf16.msra.mxu0 0
    %402 = vmatpush.bf16.msra.mxu0 0
    %403 = vmatpush.bf16.msra.mxu0 0
    %404 = vmatpush.bf16.msra.mxu0 0
    %405 = vmatpush.bf16.msra.mxu0 %v263
    %406 = vmatpush.bf16.msra.mxu0 %v262
    %407 = vmatmul.bf16.gmra.mxu0 %v397
    %v408 = vpop.f32.mrf.mxu0
    %v409 = vadd.f32 0.0, %v408
    %v410 = vpop.f32.mrf.mxu0
    %411 = vdwg.mxu0
    %v412 = vadd.f32 %v140, %v409
    %v413 = vtanh.pop %v412
    %v414 = vmul.f32 %v413, 0.5
    %v415 = vadd.f32 %v414, 0.5
    %v416 = vsel %vm59, %v413, %v415
    %v417 = vmul.f32 %v416, %v385
    %419 = vrot.lane.b32.xlu0 %v416, 64
    %v420 = vpop.permute.xlu0 %419
    %v422 = vmul.f32 %v416, %v420
    %424 = vrot.lane.b32.xlu0 %v422, 32
    %v425 = vpop.permute.xlu0 %424
    %v427 = vadd.f32 %v417, %v425
    %v428 = vtanh.pop %v427
    %430 = vrot.lane.b32.xlu0 %v428, 64
    %v431 = vpop.permute.xlu0 %430
    %v433 = vmul.f32 %v416, %v431
    %v434 = vpack.c.bf16 %v433, %v433
    %436 = vrot.lane.b32.xlu0 %v434, 32
    %v437 = vpop.permute.xlu0 %436
    %v439 = vsel %vm214, %v437, 0
    %441 = vmatpush.bf16.msra.mxu0 0
    %442 = vmatpush.bf16.msra.mxu0 0
    %443 = vmatpush.bf16.msra.mxu0 0
    %444 = vmatpush.bf16.msra.mxu0 0
    %445 = vmatpush.bf16.msra.mxu0 0
    %446 = vmatpush.bf16.msra.mxu0 0
    %447 = vmatpush.bf16.msra.mxu0 %v263
    %448 = vmatpush.bf16.msra.mxu0 %v262
    %449 = vmatmul.bf16.gmra.mxu0 %v439
    %v450 = vpop.f32.mrf.mxu0
    %v451 = vadd.f32 0.0, %v450
    %v452 = vpop.f32.mrf.mxu0
    %453 = vdwg.mxu0
    %v454 = vadd.f32 %v142, %v451
    %v455 = vtanh.pop %v454
    %v456 = vmul.f32 %v455, 0.5
    %v457 = vadd.f32 %v456, 0.5
    %v458 = vsel %vm59, %v455, %v457
    %v459 = vmul.f32 %v458, %v427
    %461 = vrot.lane.b32.xlu0 %v458, 64
    %v462 = vpop.permute.xlu0 %461
    %v464 = vmul.f32 %v458, %v462
    %466 = vrot.lane.b32.xlu0 %v464, 32
    %v467 = vpop.permute.xlu0 %466
    %v469 = vadd.f32 %v459, %v467
    %v470 = vtanh.pop %v469
    %472 = vrot.lane.b32.xlu0 %v470, 64
    %v473 = vpop.permute.xlu0 %472
    %v475 = vmul.f32 %v458, %v473
    %v476 = vpack.c.bf16 %v475, %v475
    %478 = vrot.lane.b32.xlu0 %v476, 32
    %v479 = vpop.permute.xlu0 %478
    %v481 = vsel %vm214, %v479, 0
    %483 = vmatpush.bf16.msra.mxu0 0
    %484 = vmatpush.bf16.msra.mxu0 0
    %485 = vmatpush.bf16.msra.mxu0 0
    %486 = vmatpush.bf16.msra.mxu0 0
    %487 = vmatpush.bf16.msra.mxu0 0
    %488 = vmatpush.bf16.msra.mxu0 0
    %489 = vmatpush.bf16.msra.mxu0 %v263
    %490 = vmatpush.bf16.msra.mxu0 %v262
    %491 = vmatmul.bf16.gmra.mxu0 %v481
    %v492 = vpop.f32.mrf.mxu0
    %v493 = vadd.f32 0.0, %v492
    %v494 = vpop.f32.mrf.mxu0
    %495 = vdwg.mxu0
    %v496 = vadd.f32 %v145, %v493
    %v497 = vtanh.pop %v496
    %v498 = vmul.f32 %v497, 0.5
    %v499 = vadd.f32 %v498, 0.5
    %v500 = vsel %vm59, %v497, %v499
    %v501 = vmul.f32 %v500, %v469
    %503 = vrot.lane.b32.xlu0 %v500, 64
    %v504 = vpop.permute.xlu0 %503
    %v506 = vmul.f32 %v500, %v504
    %508 = vrot.lane.b32.xlu0 %v506, 32
    %v509 = vpop.permute.xlu0 %508
    %v511 = vadd.f32 %v501, %v509
    %v512 = vtanh.pop %v511
    %514 = vrot.lane.b32.xlu0 %v512, 64
    %v515 = vpop.permute.xlu0 %514
    %v517 = vmul.f32 %v500, %v515
    %v518 = vpack.c.bf16 %v517, %v517
    %520 = vrot.lane.b32.xlu0 %v518, 32
    %v521 = vpop.permute.xlu0 %520
    %v523 = vsel %vm214, %v521, 0
    %525 = vmatpush.bf16.msra.mxu0 0
    %526 = vmatpush.bf16.msra.mxu0 0
    %527 = vmatpush.bf16.msra.mxu0 0
    %528 = vmatpush.bf16.msra.mxu0 0
    %529 = vmatpush.bf16.msra.mxu0 0
    %530 = vmatpush.bf16.msra.mxu0 0
    %531 = vmatpush.bf16.msra.mxu0 %v263
    %532 = vmatpush.bf16.msra.mxu0 %v262
    %533 = vmatmul.bf16.gmra.mxu0 %v523
    %v534 = vpop.f32.mrf.mxu0
    %v535 = vadd.f32 0.0, %v534
    %v536 = vpop.f32.mrf.mxu0
    %537 = vdwg.mxu0
    %v538 = vadd.f32 %v147, %v535
    %v539 = vtanh.pop %v538
    %v540 = vmul.f32 %v539, 0.5
    %v541 = vadd.f32 %v540, 0.5
    %v542 = vsel %vm59, %v539, %v541
    %v543 = vmul.f32 %v542, %v511
    %545 = vrot.lane.b32.xlu0 %v542, 64
    %v546 = vpop.permute.xlu0 %545
    %v548 = vmul.f32 %v542, %v546
    %550 = vrot.lane.b32.xlu0 %v548, 32
    %v551 = vpop.permute.xlu0 %550
    %v553 = vadd.f32 %v543, %v551
    %v554 = vtanh.pop %v553
    %556 = vrot.lane.b32.xlu0 %v554, 64
    %v557 = vpop.permute.xlu0 %556
    %v559 = vmul.f32 %v542, %v557
    %v560 = vpack.c.bf16 %v559, %v559
    %562 = vrot.lane.b32.xlu0 %v560, 32
    %v563 = vpop.permute.xlu0 %562
    %v568 = vunpack.c.l.b16 %v171
    %v569 = vunpack.c.l.b16 %v172
    %v570 = vunpack.c.l.b16 %v173
    %v571 = vunpack.c.l.b16 %v174
    %v572 = vpack.c.b16 %v569, %v568
    %v573 = vpack.c.b16 %v571, %v570
    %v577 = vsel %vm214, %v563, 0
    %579 = vmatpush.bf16.msra.mxu0 0
    %580 = vmatpush.bf16.msra.mxu0 0
    %581 = vmatpush.bf16.msra.mxu0 0
    %582 = vmatpush.bf16.msra.mxu0 0
    %583 = vmatpush.bf16.msra.mxu0 0
    %584 = vmatpush.bf16.msra.mxu0 0
    %585 = vmatpush.bf16.msra.mxu0 %v573
    %586 = vmatpush.bf16.msra.mxu0 %v572
    %587 = vmatmul.bf16.gmra.mxu0 %v577
    %v588 = vpop.f32.mrf.mxu0
    %v589 = vadd.f32 0.0, %v588
    %v590 = vpop.f32.mrf.mxu0
    %591 = vdwg.mxu0
    %v592 = vadd.f32 %v228, %v589
    %v593 = vmax.f32 %v592, 0.0
    %594 = vst [vmem:[#allocation7] sm:$0xff] %v593
    // Predicated region
    $region34: #{tpu_custom_call.1} parent=1 // pred_check
      _
    $region35: #{tpu_custom_call.1} parent=1 // pred_check_branch
      %596 = sbr.rel (0) target = $region37
    $region36: #{tpu_custom_call.1} parent=1 // pred_region
      %598 = vsyncadd [#allocation4], 0
      %s600 = sshll.u32 [#allocation7], 4
      %s601 = int_to_ptr.vmem [resolvable:$true] %s600
      %s602 = sshll.u32 %s6, 4
      %s603 = int_to_ptr.hbm [resolvable:$true] %s602
      %605 = dma.vmem_to_hbm [thread:$0]  %s601, 128, %s603, [#allocation4]
    $region37: #{tpu_custom_call.1} parent=1 // pred_fallthru
      _
    // Predicated region
    $region38: #{tpu_custom_call.1} parent=1 // pred_check
      _
    $region39: #{tpu_custom_call.1} parent=1 // pred_check_branch
      %607 = sbr.rel (0) target = $region41
    $region40: #{tpu_custom_call.1} parent=1 // pred_region
      %609 = dma.done [#allocation4], 128
    $region41: #{tpu_custom_call.1} parent=1 // pred_fallthru
      _
    %610 = vsyncpa [#allocation3], 1
    %611 = vsyncpa [#allocation6], 1
    %612 = vsyncpa [#allocation4], 1

</llo_original>
